<compile_context>
chip_gen: v7x
topology: tpu7x:2x2x1
jax: 0.10.0
libtpu: 0.0.40
codegen_flags: <defaults>
</compile_context>

<pallas_src>
import functools

import jax
import jax.numpy as jnp
from jax import lax
from jax.experimental import pallas as pl
from jax.experimental.pallas import tpu as pltpu


_NEG_BIG = -1e30      # finite "-inf" bias for padded vocab columns
_MIB = 1 << 20


def _round_up(a, b):
    return (a + b - 1) // b * b


def _sublane_multiple(dtype):
    return {4: 8, 2: 16, 1: 32}.get(jnp.dtype(dtype).itemsize, 8)


# ----------------------------------------------------------------------------
# Kernel helpers shared by both paths
# ----------------------------------------------------------------------------
def _logits_tile(x_ref, w_ref, b_ref):
    """x @ W_tile^T + b_tile with f32 MXU accumulation.

    The weight tile keeps nn.Linear's [vocab, d_model] layout; contracting on
    the RHS minor dim is the standard q @ k.T pattern on TPU.
    """
    return lax.dot_general(
        x_ref[...], w_ref[...],
        dimension_numbers=(((1,), (1,)), ((), ())),
        preferred_element_type=jnp.float32,
    ) + b_ref[...]


def _online_lse_update(logits, m_sc, s_sc):
    """Flash-style running max / sum(exp) update across vocab tiles."""
    m_prev = m_sc[...]
    m_new = jnp.maximum(m_prev, jnp.max(logits, axis=-1, keepdims=True))
    s_sc[...] = (jnp.exp(m_prev - m_new) * s_sc[...]
                 + jnp.sum(jnp.exp(logits - m_new), axis=-1, keepdims=True))
    m_sc[...] = m_new


# ----------------------------------------------------------------------------
# Path A: small vocab — fused, output block resident across the vocab axis
# ----------------------------------------------------------------------------
def _fused_resident_kernel(x_ref, w_ref, b_ref, o_ref, m_sc, s_sc):
    j = pl.program_id(1)
    nj = pl.num_programs(1)
    tn = w_ref.shape[0]

    @pl.when(j == 0)
    def _():
        m_sc[...] = jnp.full_like(m_sc, -jnp.inf)
        s_sc[...] = jnp.zeros_like(s_sc)

    logits = _logits_tile(x_ref, w_ref, b_ref)
    _online_lse_update(logits, m_sc, s_sc)

    # Stash raw (biased) logits into this tile's columns of the resident
    # output block; normalized in place on the final vocab step.
    col = pl.multiple_of(j * tn, 128)
    o_ref[:, pl.ds(col, tn)] = logits.astype(o_ref.dtype)

    @pl.when(j == nj - 1)
    def _():
        lse = m_sc[...] + jnp.log(s_sc[...])            # (tm, 1)
        if o_ref.dtype == jnp.float32:                  # no astype round trip
            o_ref[...] = o_ref[...] - lse
        else:
            o_ref[...] = (o_ref[...].astype(jnp.float32) - lse).astype(o_ref.dtype)


# ----------------------------------------------------------------------------
# Path B: large vocab — streamed logits + LSE, then a cheap normalize pass
# ----------------------------------------------------------------------------
def _logits_lse_kernel(x_ref, w_ref, b_ref, logits_ref, lse_ref, m_sc, s_sc):
    j = pl.program_id(1)

    @pl.when(j == 0)
    def _():
        m_sc[...] = jnp.full_like(m_sc, -jnp.inf)
        s_sc[...] = jnp.zeros_like(s_sc)

    logits = _logits_tile(x_ref, w_ref, b_ref)
    _online_lse_update(logits, m_sc, s_sc)
    logits_ref[...] = logits                            # streamed (i, j) block

    @pl.when(j == pl.num_programs(1) - 1)
    def _():
        lse_ref[...] = m_sc[...] + jnp.log(s_sc[...])


def _normalize_kernel(logits_ref, lse_ref, o_ref):
    # Subtract the log-sum-exp in f32, then downcast once.
    o_ref[...] = (logits_ref[...] - lse_ref[...]).astype(o_ref.dtype)


# ----------------------------------------------------------------------------
# Wrapper
# ----------------------------------------------------------------------------
@functools.partial(
    jax.jit, static_argnames=("tm", "tn", "compute_dtype", "vocab_resident"))
def generator_forward(x, weight, bias, *, tm=512, tn=512,
                      compute_dtype=None, vocab_resident=None):
    """log_softmax(x @ weight.T + bias, axis=-1).

    x: [batch, seq, d_model]; weight: [vocab, d_model] (nn.Linear layout);
    bias: [vocab].  compute_dtype (e.g. jnp.bfloat16) casts only the matmul
    operands — accumulation and softmax math stay f32, the output keeps
    x.dtype.
    """
    out_dtype = x.dtype
    batch, seq, d_model = x.shape
    vocab = weight.shape[0]
    m_total = batch * seq

    cdt = jnp.dtype(compute_dtype) if compute_dtype is not None else jnp.dtype(out_dtype)
    op_item = cdt.itemsize
    out_item = jnp.dtype(out_dtype).itemsize
    sub = _sublane_multiple(cdt)

    # ---- tile sizes (static under jit) ----
    # M tile: multiple of the sublane count; at least two M tiles when there
    # is enough work (megacore / v7x dual TC); minimal M padding.
    min_m_tiles = 2 if m_total > sub else 1
    n_m = max(pl.cdiv(m_total, max(tm, sub)), min_m_tiles)
    tm_eff = _round_up(pl.cdiv(m_total, n_m), sub)
    m_pad = _round_up(m_total, tm_eff)
    n_m = m_pad // tm_eff

    # Vocab tile: lane-dense multiple of 128.
    tn_eff = min(_round_up(tn, 128), _round_up(vocab, 128))
    v_pad = _round_up(vocab, tn_eff)
    n_v = v_pad // tn_eff

    # ---- operands (pad; cast matmul operands; bias pre-cast to f32) ----
    x2d = x.reshape(m_total, d_model).astype(cdt)
    w = weight.astype(cdt)
    b = bias.astype(jnp.float32)
    if m_pad != m_total:
        x2d = jnp.pad(x2d, ((0, m_pad - m_total), (0, 0)))
    if v_pad != vocab:
        w = jnp.pad(w, ((0, v_pad - vocab), (0, 0)))
        b = jnp.pad(b, (0, v_pad - vocab), constant_values=_NEG_BIG)
    b2d = b.reshape(1, v_pad)

    # ---- path selection (static) ----
    resident_out_bytes = 2 * tm_eff * v_pad * out_item   # double-buffered
    if vocab_resident is None:
        # Resident path only when it is cheap AND the output is f32 (in-place
        # normalization of a bf16 resident block would round logits before the
        # LSE subtraction).
        vocab_resident = (out_dtype == jnp.float32
                          and resident_out_bytes <= 8 * _MIB)

    # Weight BlockSpec; deeper buffering only when the vocab grid is deep
    # enough for a 3-deep pipeline to matter.
    w_spec_kwargs = {}
    if n_v >= 3:
        w_spec_kwargs["pipeline_mode"] = pl.Buffered(3)
    x_spec = pl.BlockSpec((tm_eff, d_model), lambda i, j: (i, 0))
    w_spec = pl.BlockSpec((tn_eff, d_model), lambda i, j: (j, 0), **w_spec_kwargs)
    b_spec = pl.BlockSpec((1, tn_eff), lambda i, j: (0, j))

    def _vmem_limit(n_bytes):
        return int(max(16 * _MIB, min(n_bytes + n_bytes // 2 + 4 * _MIB,
                                      64 * _MIB)))

    w_bufs = 3 if n_v >= 3 else 2
    matmul_bytes = (m_pad * d_model * op_item           # x, read once
                    + n_m * v_pad * d_model * op_item   # weight re-streamed per M tile
                    + v_pad * 4)                        # bias

    if vocab_resident:
        # ---------- single fused pass: output resident across vocab ----------
        need = (2 * tm_eff * d_model * op_item          # x blocks
                + w_bufs * tn_eff * d_model * op_item   # weight blocks
                + 2 * tn_eff * 4                        # bias blocks
                + resident_out_bytes                    # resident output blocks
                + 4 * tm_eff * 4)                       # scratch
        cost = pl.CostEstimate(
            flops=2 * m_pad * d_model * v_pad,
            transcendentals=m_pad * v_pad,
            bytes_accessed=matmul_bytes + m_pad * v_pad * out_item)
        out2d = pl.pallas_call(
            _fused_resident_kernel,
            out_shape=jax.ShapeDtypeStruct((m_pad, v_pad), out_dtype),
            grid_spec=pltpu.PrefetchScalarGridSpec(
                num_scalar_prefetch=0,
                grid=(n_m, n_v),
                in_specs=[x_spec, w_spec, b_spec],
                out_specs=pl.BlockSpec((tm_eff, v_pad), lambda i, j: (i, 0)),
                scratch_shapes=[pltpu.VMEM((tm_eff, 1), jnp.float32),   # running max
                                pltpu.VMEM((tm_eff, 1), jnp.float32)],  # running sum-exp
            ),
            compiler_params=pltpu.CompilerParams(
                dimension_semantics=("parallel", "arbitrary"),
                vmem_limit_bytes=_vmem_limit(need)),
            cost_estimate=cost,
        )(x2d, w, b2d)
    else:
        # ---------- pass 1: streamed raw logits + per-row log-sum-exp --------
        need1 = (2 * tm_eff * d_model * op_item
                 + w_bufs * tn_eff * d_model * op_item
                 + 2 * tn_eff * 4
                 + 2 * tm_eff * tn_eff * 4              # logits out blocks
                 + 2 * tm_eff * 4                       # lse out blocks
                 + 4 * tm_eff * 4)                      # scratch
        cost1 = pl.CostEstimate(
            flops=2 * m_pad * d_model * v_pad,
            transcendentals=m_pad * v_pad,
            bytes_accessed=matmul_bytes + m_pad * v_pad * 4 + m_pad * 4)
        logits2d, lse2d = pl.pallas_call(
            _logits_lse_kernel,
            out_shape=(jax.ShapeDtypeStruct((m_pad, v_pad), jnp.float32),
                       jax.ShapeDtypeStruct((m_pad, 1), jnp.float32)),
            grid_spec=pltpu.PrefetchScalarGridSpec(
                num_scalar_prefetch=0,
                grid=(n_m, n_v),
                in_specs=[x_spec, w_spec, b_spec],
                out_specs=[pl.BlockSpec((tm_eff, tn_eff), lambda i, j: (i, j)),
                           pl.BlockSpec((tm_eff, 1), lambda i, j: (i, 0))],
                scratch_shapes=[pltpu.VMEM((tm_eff, 1), jnp.float32),
                                pltpu.VMEM((tm_eff, 1), jnp.float32)],
            ),
            compiler_params=pltpu.CompilerParams(
                dimension_semantics=("parallel", "arbitrary"),
                vmem_limit_bytes=_vmem_limit(need1)),
            cost_estimate=cost1,
        )(x2d, w, b2d)

        # ---------- pass 2: cheap elementwise normalize (f32 subtract) -------
        need2 = 2 * (tm_eff * tn_eff * (4 + out_item) + tm_eff * 4)
        cost2 = pl.CostEstimate(
            flops=m_pad * v_pad,
            transcendentals=0,
            bytes_accessed=m_pad * v_pad * (4 + out_item) + m_pad * 4)
        out2d = pl.pallas_call(
            _normalize_kernel,
            out_shape=jax.ShapeDtypeStruct((m_pad, v_pad), out_dtype),
            grid_spec=pltpu.PrefetchScalarGridSpec(
                num_scalar_prefetch=0,
                grid=(n_m, n_v),
                in_specs=[pl.BlockSpec((tm_eff, tn_eff), lambda i, j: (i, j)),
                          pl.BlockSpec((tm_eff, 1), lambda i, j: (i, 0))],
                out_specs=pl.BlockSpec((tm_eff, tn_eff), lambda i, j: (i, j)),
            ),
            compiler_params=pltpu.CompilerParams(
                dimension_semantics=("parallel", "parallel"),
                vmem_limit_bytes=_vmem_limit(need2)),
            cost_estimate=cost2,
        )(logits2d, lse2d)

    return out2d[:m_total, :vocab].reshape(batch, seq, vocab)


if __name__ == "__main__":
    # Small shapes consistent with the module: d_model=32, vocab_size=64.
    batch, seq, d_model, vocab_size = 2, 8, 32, 64

    key = jax.random.PRNGKey(0)
    kx, kw, kb = jax.random.split(key, 3)

    x = jax.random.normal(kx, (batch, seq, d_model), dtype=jnp.float32)
    # Deterministic init mimicking nn.Linear's uniform(-1/sqrt(d_model), ...)
    bound = 1.0 / (d_model ** 0.5)
    weight = jax.random.uniform(kw, (vocab_size, d_model),
                                minval=-bound, maxval=bound, dtype=jnp.float32)
    bias = jax.random.uniform(kb, (vocab_size,),
                              minval=-bound, maxval=bound, dtype=jnp.float32)

    ref = jax.nn.log_softmax(
        jnp.einsum("bsd,vd->bsv", x, weight, precision="highest") + bias,
        axis=-1)

    # Default (auto): small vocab + f32 output -> fused vocab-resident path.
    out_resident = jax.block_until_ready(generator_forward(x, weight, bias))
    assert out_resident.shape == (batch, seq, vocab_size)
    assert jnp.allclose(out_resident, ref, atol=1e-4, rtol=1e-4), \
        float(jnp.max(jnp.abs(out_resident - ref)))

    # Forced streamed path (what large-vocab / v7x / bf16-output configs use):
    # logits+LSE pass followed by the cheap f32-subtract normalize pass.
    out_streamed = jax.block_until_ready(
        generator_forward(x, weight, bias, vocab_resident=False))
    assert out_streamed.shape == (batch, seq, vocab_size)
    assert jnp.allclose(out_streamed, ref, atol=1e-4, rtol=1e-4), \
        float(jnp.max(jnp.abs(out_streamed - ref)))

    print("KERNEL_OK")
</pallas_src>

<mosaic_0001>
module attributes {stable_mosaic.version = 11 : i64} {
  func.func @_fused_resident_kernel(%arg0: i32, %arg1: i32, %arg2: memref<8x32xf32, #tpu.memory_space<vmem>>, %arg3: memref<128x32xf32, #tpu.memory_space<vmem>>, %arg4: memref<1x128xf32, #tpu.memory_space<vmem>>, %arg5: memref<8x128xf32, #tpu.memory_space<vmem>>, %arg6: memref<8x1xf32, #tpu.memory_space<vmem>>, %arg7: memref<8x1xf32, #tpu.memory_space<vmem>>) attributes {dimension_semantics = [#tpu.dimension_semantics<parallel>, #tpu.dimension_semantics<arbitrary>], iteration_bounds = array<i64: 2, 1>, scalar_prefetch = 0 : i64, scratch_operands = 2 : i64, tpu.core_type = #tpu.core_type<tc>, window_params = [{transform_indices = @transform_0, window_bounds = array<i64: 8, 32>}, {transform_indices = @transform_1, window_bounds = array<i64: 128, 32>}, {transform_indices = @transform_2, window_bounds = array<i64: 1, 128>}, {transform_indices = @transform_3, window_bounds = array<i64: 8, 128>}]} {
    %c0_i32 = arith.constant 0 : i32
    %0 = arith.cmpi eq, %arg1, %c0_i32 : i32
    %1 = arith.extui %0 : i1 to i32
    %c0_i32_0 = arith.constant 0 : i32
    %2 = arith.cmpi ne, %1, %c0_i32_0 : i32
    scf.if %2 {
      %cst_19 = arith.constant 0xFF800000 : f32
      %32 = vector.broadcast %cst_19 : f32 to vector<8x1xf32>
      %c0_20 = arith.constant 0 : index
      %c0_21 = arith.constant 0 : index
      %33 = vector.load %arg6[%c0_20, %c0_21] : memref<8x1xf32, #tpu.memory_space<vmem>>, vector<8x1xf32>
      tpu.vector_store %arg6[%c0_20, %c0_21], %32 {strides = array<i32>} : memref<8x1xf32, #tpu.memory_space<vmem>>, vector<8x1xf32>,
      %cst_22 = arith.constant 0.000000e+00 : f32
      %34 = vector.broadcast %cst_22 : f32 to vector<8x1xf32>
      %c0_23 = arith.constant 0 : index
      %c0_24 = arith.constant 0 : index
      %35 = vector.load %arg7[%c0_23, %c0_24] : memref<8x1xf32, #tpu.memory_space<vmem>>, vector<8x1xf32>
      tpu.vector_store %arg7[%c0_23, %c0_24], %34 {strides = array<i32>} : memref<8x1xf32, #tpu.memory_space<vmem>>, vector<8x1xf32>,
    } else {
    }
    %c0 = arith.constant 0 : index
    %c0_1 = arith.constant 0 : index
    %3 = vector.load %arg2[%c0, %c0_1] : memref<8x32xf32, #tpu.memory_space<vmem>>, vector<8x32xf32>
    %c0_2 = arith.constant 0 : index
    %c0_3 = arith.constant 0 : index
    %4 = vector.load %arg3[%c0_2, %c0_3] : memref<128x32xf32, #tpu.memory_space<vmem>>, vector<128x32xf32>
    %cst = arith.constant dense<0.000000e+00> : vector<8x128xf32>
    %5 = tpu.matmul %3, %4, %cst {dimension_numbers = #tpu.dot_dimension_numbers<[1], [1], [0], [0], [0, 0, 1, 0], [], []>} : vector<8x32xf32>, vector<128x32xf32>, vector<8x128xf32> -> vector<8x128xf32>
    %c0_4 = arith.constant 0 : index
    %c0_5 = arith.constant 0 : index
    %6 = vector.load %arg4[%c0_4, %c0_5] : memref<1x128xf32, #tpu.memory_space<vmem>>, vector<1x128xf32>
    %7 = vector.broadcast %6 : vector<1x128xf32> to vector<8x128xf32>
    %8 = arith.addf %5, %7 : vector<8x128xf32>
    %c0_6 = arith.constant 0 : index
    %c0_7 = arith.constant 0 : index
    %9 = vector.load %arg6[%c0_6, %c0_7] : memref<8x1xf32, #tpu.memory_space<vmem>>, vector<8x1xf32>
    %cst_8 = arith.constant dense<0xFF800000> : vector<8xf32>
    %10 = vector.multi_reduction <maximumf>, %8, %cst_8 [1] : vector<8x128xf32> to vector<8xf32>
    %11 = vector.shape_cast %10 : vector<8xf32> to vector<8x1xf32>
    %12 = arith.maximumf %9, %11 : vector<8x1xf32>
    %13 = arith.subf %9, %12 : vector<8x1xf32>
    %14 = math.exp %13 : vector<8x1xf32>
    %c0_9 = arith.constant 0 : index
    %c0_10 = arith.constant 0 : index
    %15 = vector.load %arg7[%c0_9, %c0_10] : memref<8x1xf32, #tpu.memory_space<vmem>>, vector<8x1xf32>
    %16 = arith.mulf %14, %15 : vector<8x1xf32>
    %17 = vector.broadcast %12 : vector<8x1xf32> to vector<8x128xf32>
    %18 = arith.subf %8, %17 : vector<8x128xf32>
    %19 = math.exp %18 : vector<8x128xf32>
    %cst_11 = arith.constant dense<0.000000e+00> : vector<8xf32>
    %20 = vector.multi_reduction <add>, %19, %cst_11 [1] : vector<8x128xf32> to vector<8xf32>
    %21 = vector.shape_cast %20 : vector<8xf32> to vector<8x1xf32>
    %22 = arith.addf %16, %21 : vector<8x1xf32>
    %c0_12 = arith.constant 0 : index
    %c0_13 = arith.constant 0 : index
    %23 = vector.load %arg7[%c0_12, %c0_13] : memref<8x1xf32, #tpu.memory_space<vmem>>, vector<8x1xf32>
    tpu.vector_store %arg7[%c0_12, %c0_13], %22 {strides = array<i32>} : memref<8x1xf32, #tpu.memory_space<vmem>>, vector<8x1xf32>,
    %c0_14 = arith.constant 0 : index
    %c0_15 = arith.constant 0 : index
    %24 = vector.load %arg6[%c0_14, %c0_15] : memref<8x1xf32, #tpu.memory_space<vmem>>, vector<8x1xf32>
    tpu.vector_store %arg6[%c0_14, %c0_15], %12 {strides = array<i32>} : memref<8x1xf32, #tpu.memory_space<vmem>>, vector<8x1xf32>,
    %c128_i32 = arith.constant 128 : i32
    %25 = arith.muli %arg1, %c128_i32 : i32
    %26 = tpu.assume_multiple %25, 128 : i32
    %c0_16 = arith.constant 0 : index
    %27 = arith.index_cast %26 : i32 to index
    %28 = vector.load %arg5[%c0_16, %27] : memref<8x128xf32, #tpu.memory_space<vmem>>, vector<8x128xf32>
    tpu.vector_store %arg5[%c0_16, %27], %8 {strides = array<i32>} : memref<8x128xf32, #tpu.memory_space<vmem>>, vector<8x128xf32>,
    %c0_i32_17 = arith.constant 0 : i32
    %29 = arith.cmpi eq, %arg1, %c0_i32_17 : i32
    %30 = arith.extui %29 : i1 to i32
    %c0_i32_18 = arith.constant 0 : i32
    %31 = arith.cmpi ne, %30, %c0_i32_18 : i32
    scf.if %31 {
      %c0_19 = arith.constant 0 : index
      %c0_20 = arith.constant 0 : index
      %32 = vector.load %arg6[%c0_19, %c0_20] : memref<8x1xf32, #tpu.memory_space<vmem>>, vector<8x1xf32>
      %c0_21 = arith.constant 0 : index
      %c0_22 = arith.constant 0 : index
      %33 = vector.load %arg7[%c0_21, %c0_22] : memref<8x1xf32, #tpu.memory_space<vmem>>, vector<8x1xf32>
      %34 = math.log %33 : vector<8x1xf32>
      %35 = arith.addf %32, %34 : vector<8x1xf32>
      %c0_23 = arith.constant 0 : index
      %c0_24 = arith.constant 0 : index
      %36 = vector.load %arg5[%c0_23, %c0_24] : memref<8x128xf32, #tpu.memory_space<vmem>>, vector<8x128xf32>
      %37 = vector.broadcast %35 : vector<8x1xf32> to vector<8x128xf32>
      %38 = arith.subf %36, %37 : vector<8x128xf32>
      %c0_25 = arith.constant 0 : index
      %c0_26 = arith.constant 0 : index
      %39 = vector.load %arg5[%c0_25, %c0_26] : memref<8x128xf32, #tpu.memory_space<vmem>>, vector<8x128xf32>
      tpu.vector_store %arg5[%c0_25, %c0_26], %38 {strides = array<i32>} : memref<8x128xf32, #tpu.memory_space<vmem>>, vector<8x128xf32>,
    } else {
    }
    return
  }
  func.func @transform_0(%arg0: i32, %arg1: i32) -> (i32, i32) {
    %c0_i32 = arith.constant 0 : i32
    %c0_i32_0 = arith.constant 0 : i32
    return %arg0, %c0_i32 : i32, i32
  }
  func.func @transform_1(%arg0: i32, %arg1: i32) -> (i32, i32) {
    %c0_i32 = arith.constant 0 : i32
    %c0_i32_0 = arith.constant 0 : i32
    return %arg1, %c0_i32 : i32, i32
  }
  func.func @transform_2(%arg0: i32, %arg1: i32) -> (i32, i32) {
    %c0_i32 = arith.constant 0 : i32
    %c0_i32_0 = arith.constant 0 : i32
    return %c0_i32, %arg1 : i32, i32
  }
  func.func @transform_3(%arg0: i32, %arg1: i32) -> (i32, i32) {
    %c0_i32 = arith.constant 0 : i32
    %c0_i32_0 = arith.constant 0 : i32
    return %arg0, %c0_i32 : i32, i32
  }
}

</mosaic_0001>

<llo_original>
// kernel: generator_forward.1
$region0: #{generator_forward.1}
  #allocation0 [shape = 'u32[]', space=smem, size = 0x4, offset = 0x4, fixed_abs, tag = 'smem constant byte address 0x4 - core index']
  #allocation1 [shape = 'u32[144,128]{1,0:T(1,128)}', space=vmem, size = 0x12000, scoped, tag = 'internal scratch']
  #allocation2 [shape = 'f32[8,1]{1,0:T(8,128)}', space=vmem, size = 0x1000, scoped, tag = 'scratch operand']
  #allocation3 [shape = 'f32[8,1]{1,0:T(8,128)}', space=vmem, size = 0x1000, scoped, tag = 'scratch operand']
  %s0 = inlined_call_operand.vmem [shape: f32[16,32], index: 0, kind: input, shape index: {}]
  %s1 = inlined_call_operand.vmem [shape: f32[128,32], index: 1, kind: input, shape index: {}]
  %s2 = inlined_call_operand.vmem [shape: f32[1,128], index: 2, kind: input, shape index: {}]
  %s3 = inlined_call_operand.vmem [shape: f32[16,128], index: 3, kind: output, shape index: {}]
  %s4 = sld [smem:[#allocation0]]
  $region53: #{generator_forward.1} parent=0
    _
  %s6 = ssub.s32 1, %s4
  %s7 = scalar_select 0, %s6, %s4
  loop: start=0, step=1, limit=4
  $region2: #{generator_forward.1} parent=0 // loop_pre_header
    _
  $region3: #{generator_forward.1} parent=0 // loop_header
    %s9 = sphi 0, %s13
    %p10 = scmp.ge.s32.totalorder %s9, 4
    %s16 = sphi 0, %s28
    %s17 = sphi 0, %s24
    %s18 = sphi 0, %s16
    %s19 = sphi 0, %s17
    %s20 = sphi 0, %s18
    %s21 = sphi 0, %s19
    %s31 = sphi 0, %s33
    %s34 = sphi 0, %s31
    %s35 = sphi 0, %s34
    %s51 = sphi 0, %s35
    %s57 = sphi 0, %s59
    %s60 = sphi 0, %s57
    %s61 = sphi 0, %s60
    %s77 = sphi 0, %s61
    %s83 = sphi 0, %s85
    %s86 = sphi 0, %s83
    %s87 = sphi 0, %s86
    %s103 = sphi 0, %s87
    %s109 = sphi 0, %s111
    %s112 = sphi 0, %s109
    %s113 = sphi 0, %s112
    %s129 = sphi 0, %s113
  $region4: #{generator_forward.1} parent=0 // loop_header_branch
    %12 = sbr.rel (%p10) target = $region8
  $region5: #{generator_forward.1} parent=0 // loop_body
    %s14 = ssub.s32 %s9, 1
    %s15 = ssub.s32 %s9, 2
    %s22 = sadd.s32 1, %s17
    %p23 = scmp.ge.s32.totalorder %s22, 1
    %s24 = scalar_select %p23, 0, %s22
    %s25 = sadd.s32 1, %s16
    %s26 = scalar_select %p23, %s25, %s16
    %p27 = scmp.ge.s32.totalorder %s26, 2
    %s28 = scalar_select %p27, 0, %s26
    %s29 = ssub.s32 %s16, %s28
    %p30 = scmp.eq.s32.totalorder %s29, 0
    %s32 = sadd.s32 %s31, 1
    %s33 = scalar_select %p30, %s31, %s32
    %p36 = pneg %p30
    %p37 = scmp.eq.s32.totalorder %s9, 1
    %p38 = por %p36, %p37
    %p39 = scmp.ne.s32.totalorder %s31, %s34
    %p40 = scmp.eq.s32.totalorder %s9, 0
    %p41 = por %p39, %p40
    %p42 = scmp.ne.s32.totalorder %s31, %s34
    %p43 = scmp.eq.s32.totalorder %s14, 1
    %p44 = por %p42, %p43
    %p45 = scmp.ne.s32.totalorder %s34, %s35
    %p46 = scmp.eq.s32.totalorder %s14, 0
    %p47 = por %p45, %p46
    %p48 = scmp.ne.s32.totalorder %s34, %s35
    %p49 = scmp.eq.s32.totalorder %s15, 1
    %p50 = por %p48, %p49
    %p52 = scmp.ne.s32.totalorder %s35, %s51
    %p53 = scmp.eq.s32.totalorder %s15, 0
    %p54 = por %p52, %p53
    %s55 = ssub.s32 %s17, %s24
    %p56 = scmp.eq.s32.totalorder %s55, 0
    %s58 = sadd.s32 %s57, 1
    %s59 = scalar_select %p56, %s57, %s58
    %p62 = pneg %p56
    %p63 = scmp.eq.s32.totalorder %s9, 1
    %p64 = por %p62, %p63
    %p65 = scmp.ne.s32.totalorder %s57, %s60
    %p66 = scmp.eq.s32.totalorder %s9, 0
    %p67 = por %p65, %p66
    %p68 = scmp.ne.s32.totalorder %s57, %s60
    %p69 = scmp.eq.s32.totalorder %s14, 1
    %p70 = por %p68, %p69
    %p71 = scmp.ne.s32.totalorder %s60, %s61
    %p72 = scmp.eq.s32.totalorder %s14, 0
    %p73 = por %p71, %p72
    %p74 = scmp.ne.s32.totalorder %s60, %s61
    %p75 = scmp.eq.s32.totalorder %s15, 1
    %p76 = por %p74, %p75
    %p78 = scmp.ne.s32.totalorder %s61, %s77
    %p79 = scmp.eq.s32.totalorder %s15, 0
    %p80 = por %p78, %p79
    %s81 = ssub.s32 %s17, %s24
    %p82 = scmp.eq.s32.totalorder %s81, 0
    %s84 = sadd.s32 %s83, 1
    %s85 = scalar_select %p82, %s83, %s84
    %p88 = pneg %p82
    %p89 = scmp.eq.s32.totalorder %s9, 1
    %p90 = por %p88, %p89
    %p91 = scmp.ne.s32.totalorder %s83, %s86
    %p92 = scmp.eq.s32.totalorder %s9, 0
    %p93 = por %p91, %p92
    %p94 = scmp.ne.s32.totalorder %s83, %s86
    %p95 = scmp.eq.s32.totalorder %s14, 1
    %p96 = por %p94, %p95
    %p97 = scmp.ne.s32.totalorder %s86, %s87
    %p98 = scmp.eq.s32.totalorder %s14, 0
    %p99 = por %p97, %p98
    %p100 = scmp.ne.s32.totalorder %s86, %s87
    %p101 = scmp.eq.s32.totalorder %s15, 1
    %p102 = por %p100, %p101
    %p104 = scmp.ne.s32.totalorder %s87, %s103
    %p105 = scmp.eq.s32.totalorder %s15, 0
    %p106 = por %p104, %p105
    %s107 = ssub.s32 %s16, %s28
    %p108 = scmp.eq.s32.totalorder %s107, 0
    %s110 = sadd.s32 %s109, 1
    %s111 = scalar_select %p108, %s109, %s110
    %p114 = pneg %p108
    %p115 = scmp.eq.s32.totalorder %s9, 1
    %p116 = por %p114, %p115
    %p117 = scmp.ne.s32.totalorder %s109, %s112
    %p118 = scmp.eq.s32.totalorder %s9, 0
    %p119 = por %p117, %p118
    %p120 = scmp.ne.s32.totalorder %s109, %s112
    %p121 = scmp.eq.s32.totalorder %s14, 1
    %p122 = por %p120, %p121
    %p123 = scmp.ne.s32.totalorder %s112, %s113
    %p124 = scmp.eq.s32.totalorder %s14, 0
    %p125 = por %p123, %p124
    %p126 = scmp.ne.s32.totalorder %s112, %s113
    %p127 = scmp.eq.s32.totalorder %s15, 1
    %p128 = por %p126, %p127
    %p130 = scmp.ne.s32.totalorder %s113, %s129
    %p131 = scmp.eq.s32.totalorder %s15, 0
    %p132 = por %p130, %p131
    %p133 = scmp.le.s32.totalorder 1, %s9
    %p134 = scmp.lt.s32.totalorder %s9, 3
    %p135 = pnand %p133, %p134
    %p136 = pneg %p135
    // Predicated region
    $region9: #{generator_forward.1} parent=5 // pred_check
      _
    $region10: #{generator_forward.1} parent=5 // pred_check_branch
      %138 = sbr.rel (%p135) target = $region12
    $region11: #{generator_forward.1} parent=5 // pred_region
      %s139 = ssub.s32 %s9, 1
      // Predicated region
      $region13: #{generator_forward.1} parent=11 // pred_check
        %p140 = pneg %p73
      $region14: #{generator_forward.1} parent=11 // pred_check_branch
        %142 = sbr.rel (%p140) target = $region16
      $region15: #{generator_forward.1} parent=11 // pred_region
        %s143 = smul.u32 16, %s19
        %p144 = scmp.lt.s32.totalorder %s143, 15
        %s145 = scalar_select %p144, %s143, 15
        %s146 = smul.addr %s145, 8
        %s147 = scalar_lea.vmem %s1, %s146
        %s148 = smul.u32 16, %s19
      $region16: #{generator_forward.1} parent=11 // pred_fallthru
        _
      // Predicated region
      $region17: #{generator_forward.1} parent=11 // pred_check
        %p149 = pneg %p99
      $region18: #{generator_forward.1} parent=11 // pred_check_branch
        %151 = sbr.rel (%p149) target = $region20
      $region19: #{generator_forward.1} parent=11 // pred_region
        %p152 = scmp.lt.s32.totalorder %s19, 0
        %s153 = scalar_select %p152, %s19, 0
        %s154 = scalar_lea.vmem %s2, %s153
      $region20: #{generator_forward.1} parent=11 // pred_fallthru
        _
    $region12: #{generator_forward.1} parent=5 // pred_fallthru
      _
    %p155 = scmp.lt.s32.totalorder %s9, 2
    // Predicated region
    $region21: #{generator_forward.1} parent=5 // pred_check
      %p156 = pneg %p155
    $region22: #{generator_forward.1} parent=5 // pred_check_branch
      %158 = sbr.rel (%p156) target = $region24
    $region23: #{generator_forward.1} parent=5 // pred_region
      // Predicated region
      $region25: #{generator_forward.1} parent=23 // pred_check
        %p159 = pneg %p41
      $region26: #{generator_forward.1} parent=23 // pred_check_branch
        %161 = sbr.rel (%p159) target = $region28
      $region27: #{generator_forward.1} parent=23 // pred_region
        %p162 = scmp.lt.s32.totalorder %s16, 1
        %s163 = scalar_select %p162, %s16, 1
        %s164 = smul.addr %s163, 8
        %s165 = scalar_lea.vmem %s0, %s164
      $region28: #{generator_forward.1} parent=23 // pred_fallthru
        _
    $region24: #{generator_forward.1} parent=5 // pred_fallthru
      _
    %p166 = scmp.le.s32.totalorder 1, %s9
    %p167 = scmp.lt.s32.totalorder %s9, 3
    %p168 = pnand %p166, %p167
    %p169 = pneg %p168
    // Predicated region
    $region29: #{generator_forward.1} parent=5 // pred_check
      _
    $region30: #{generator_forward.1} parent=5 // pred_check_branch
      %171 = sbr.rel (%p168) target = $region32
    $region31: #{generator_forward.1} parent=5 // pred_region
      %s172 = ssub.s32 %s9, 1
      %p173 = scmp.lt.s32.totalorder %s18, 1
      %s174 = scalar_select %p173, %s18, 1
      %s175 = smul.addr %s174, 8
      %s176 = scalar_lea.vmem %s0, %s175
      %p177 = pneg %p47
      %p178 = pneg %p44
      %s179 = smul.u32 16, %s19
      %p180 = scmp.lt.s32.totalorder %s179, 15
      %s181 = scalar_select %p180, %s179, 15
      %s182 = smul.addr %s181, 8
      %s183 = scalar_lea.vmem %s1, %s182
      %p184 = pneg %p73
      %p185 = pneg %p70
      %p186 = scmp.lt.s32.totalorder %s19, 0
      %s187 = scalar_select %p186, %s19, 0
      %s188 = scalar_lea.vmem %s2, %s187
      %p189 = pneg %p99
      %p190 = pneg %p96
      %p191 = pneg %p125
      %p192 = pneg %p122
      %p193 = scmp.lt.s32.totalorder %s18, 1
      %s194 = scalar_select %p193, %s18, 1
      %s195 = smul.addr %s194, 8
      %s196 = scalar_lea.vmem %s3, %s195
      %p197 = scmp.lt.s32.totalorder %s18, 1
      %s198 = scalar_select %p197, %s18, 1
      %s199 = smul.addr %s198, 8
      %s200 = scalar_lea.vmem %s0, %s199
      %s201 = smul.u32 16, %s19
      %p202 = scmp.lt.s32.totalorder %s201, 15
      %s203 = scalar_select %p202, %s201, 15
      %s204 = smul.addr %s203, 8
      %s205 = scalar_lea.vmem %s1, %s204
      %s206 = smul.u32 16, %s19
      %p207 = scmp.lt.s32.totalorder %s19, 0
      %s208 = scalar_select %p207, %s19, 0
      %s209 = scalar_lea.vmem %s2, %s208
      %p210 = scmp.lt.s32.totalorder %s18, 1
      %s211 = scalar_select %p210, %s18, 1
      %s212 = smul.addr %s211, 8
      %s213 = scalar_lea.vmem %s3, %s212
      %p214 = scmp.eq.s32.totalorder %s19, 0
      // Predicated region
      $region33: #{generator_forward.1} parent=31 // pred_check
        %p215 = pneg %p214
      $region34: #{generator_forward.1} parent=31 // pred_check_branch
        %217 = sbr.rel (%p215) target = $region36
      $region35: #{generator_forward.1} parent=31 // pred_region
        %vm218 = vcmask 7168
        %219 = vst.msk [vmem:[#allocation2] sm:$0xff] %vm218, -inf
        %220 = vst.msk [vmem:[#allocation3] sm:$0xff] %vm218, 0.0
      $region36: #{generator_forward.1} parent=31 // pred_fallthru
        _
      %v221 = vld [vmem:[%s200] sm:$0xff]
      %v222 = vld [vmem:[%s205] sm:$0xff]
      %v223 = vld [vmem:[%s205 + $0x8] sm:$0xff]
      %v224 = vld [vmem:[%s205 + $0x10] sm:$0xff]
      %v225 = vld [vmem:[%s205 + $0x18] sm:$0xff]
      %v226 = vld [vmem:[%s205 + $0x20] sm:$0xff]
      %v227 = vld [vmem:[%s205 + $0x28] sm:$0xff]
      %v228 = vld [vmem:[%s205 + $0x30] sm:$0xff]
      %v229 = vld [vmem:[%s205 + $0x38] sm:$0xff]
      %v230 = vld [vmem:[%s205 + $0x40] sm:$0xff]
      %v231 = vld [vmem:[%s205 + $0x48] sm:$0xff]
      %v232 = vld [vmem:[%s205 + $0x50] sm:$0xff]
      %v233 = vld [vmem:[%s205 + $0x58] sm:$0xff]
      %v234 = vld [vmem:[%s205 + $0x60] sm:$0xff]
      %v235 = vld [vmem:[%s205 + $0x68] sm:$0xff]
      %v236 = vld [vmem:[%s205 + $0x70] sm:$0xff]
      %v237 = vld [vmem:[%s205 + $0x78] sm:$0xff]
      %v238 = vld [vmem:[%s209] sm:$0x1]
      %v240 = vlaneseq
      %v241 = vshrl.u32 %v240, 7
      %v242 = vsub.s32 0, %v241
      %v243 = vrot.slane %v238, %v242
      %vm245 = vcmask 261120
      %v247 = vsel %vm245, %v221, 0
      %v250 = vsel %vm245, %v222, 0
      %v253 = vsel %vm245, %v223, 0
      %v256 = vsel %vm245, %v224, 0
      %v259 = vsel %vm245, %v225, 0
      %v262 = vsel %vm245, %v226, 0
      %v265 = vsel %vm245, %v227, 0
      %v268 = vsel %vm245, %v228, 0
      %v271 = vsel %vm245, %v229, 0
      %v274 = vsel %vm245, %v230, 0
      %v277 = vsel %vm245, %v231, 0
      %v280 = vsel %vm245, %v232, 0
      %v283 = vsel %vm245, %v233, 0
      %v286 = vsel %vm245, %v234, 0
      %v289 = vsel %vm245, %v235, 0
      %v292 = vsel %vm245, %v236, 0
      %v295 = vsel %vm245, %v237, 0
      %297 = vmatprep.subr.mxu0 0.0
      %298 = vmatpush1.xpose.msra.mxu0 %v250
      %299 = vmatprep.subr.mxu0 0.0
      %300 = vmatpush1.xpose.msra.mxu0 %v253
      %301 = vmatprep.subr.mxu0 0.0
      %302 = vmatpush1.xpose.msra.mxu0 %v256
      %303 = vmatprep.subr.mxu0 0.0
      %304 = vmatpush1.xpose.msra.mxu0 %v259
      %305 = vmatprep.subr.mxu0 0.0
      %306 = vmatpush1.xpose.msra.mxu0 %v262
      %307 = vmatprep.subr.mxu0 0.0
      %308 = vmatpush1.xpose.msra.mxu0 %v265
      %309 = vmatprep.subr.mxu0 0.0
      %310 = vmatpush1.xpose.msra.mxu0 %v268
      %311 = vmatprep.subr.mxu0 0.0
      %312 = vmatpush1.xpose.msra.mxu0 %v271
      %313 = vmatprep.subr.mxu0 0.0
      %314 = vmatpush1.xpose.msra.mxu0 %v274
      %315 = vmatprep.subr.mxu0 0.0
      %316 = vmatpush1.xpose.msra.mxu0 %v277
      %317 = vmatprep.subr.mxu0 0.0
      %318 = vmatpush1.xpose.msra.mxu0 %v280
      %319 = vmatprep.subr.mxu0 0.0
      %320 = vmatpush1.xpose.msra.mxu0 %v283
      %321 = vmatprep.subr.mxu0 0.0
      %322 = vmatpush1.xpose.msra.mxu0 %v286
      %323 = vmatprep.subr.mxu0 0.0
      %324 = vmatpush1.xpose.msra.mxu0 %v289
      %325 = vmatprep.subr.mxu0 0.0
      %326 = vmatpush1.xpose.msra.mxu0 %v292
      %327 = vmatprep.subr.mxu0 0.0
      %328 = vmatpush1.xpose.msra.mxu0 %v295
      %329 = vmatprep.subr.mxu0 0.0
      %330 = vmatpush1.xpose.msra.mxu0 0.0
      %331 = vmatprep.subr.mxu0 0.0
      %332 = vmatpush1.xpose.msra.mxu0 0.0
      %333 = vmatprep.subr.mxu0 0.0
      %334 = vmatpush1.xpose.msra.mxu0 0.0
      %335 = vmatprep.subr.mxu0 0.0
      %336 = vmatpush1.xpose.msra.mxu0 0.0
      %337 = vmatprep.subr.mxu0 0.0
      %338 = vmatpush1.xpose.msra.mxu0 0.0
      %339 = vmatprep.subr.mxu0 0.0
      %340 = vmatpush1.xpose.msra.mxu0 0.0
      %341 = vmatprep.subr.mxu0 0.0
      %342 = vmatpush1.xpose.msra.mxu0 0.0
      %343 = vmatprep.subr.mxu0 0.0
      %344 = vmatpush1.xpose.msra.mxu0 0.0
      %345 = vmatprep.subr.mxu0 0.0
      %346 = vmatpush1.xpose.msra.mxu0 0.0
      %347 = vmatprep.subr.mxu0 0.0
      %348 = vmatpush1.xpose.msra.mxu0 0.0
      %349 = vmatprep.subr.mxu0 0.0
      %350 = vmatpush1.xpose.msra.mxu0 0.0
      %351 = vmatprep.subr.mxu0 0.0
      %352 = vmatpush1.xpose.msra.mxu0 0.0
      %353 = vmatprep.subr.mxu0 0.0
      %354 = vmatpush1.xpose.msra.mxu0 0.0
      %355 = vmatprep.subr.mxu0 0.0
      %356 = vmatpush1.xpose.msra.mxu0 0.0
      %357 = vmatprep.subr.mxu0 0.0
      %358 = vmatpush1.xpose.msra.mxu0 0.0
      %359 = vmatprep.subr.mxu0 0.0
      %360 = vmatpush1.xpose.msra.mxu0 0.0
      %361 = vmatprep.mubr.f32.mxu0 0.0
      %362 = vmatmul.mubr.f32.gmra.mrb[0].mxu0 %v247
      %v363 = vpop.f32.mrb[0].mxu0
      %v364 = vadd.f32 %v243, %v363
      %v365 = vpop.f32.mrb[0].mxu0
      %366 = vdwg.mxu0
      %v367 = vld [vmem:[#allocation2] sm:$0xff]
      %368 = vmax.xlane.f32.xlu0 %v364
      %v369 = vpop.xlane.xlu0 %368
      %v370 = vmax.f32 %v367, %v369
      %v371 = vsub.f32 %v367, %v370
      %v372 = vmul.f32 %v371, 1.442695
      %v373 = vpow.pop %v372
      %v374 = vld [vmem:[#allocation3] sm:$0xff]
      %v375 = vmul.f32 %v373, %v374
      %377 = vset.pattern.permute.xlu0 0
      %378 = vperm.xlu0 %377, %v370
      %v379 = vpop.permute.xlu0 %378
      %v381 = vsub.f32 %v364, %v379
      %v382 = vmul.f32 %v381, 1.442695
      %v383 = vpow.pop %v382
      %384 = vadd.xlane.f32.xlu0 %v383
      %v385 = vpop.xlane.xlu0 %384
      %v386 = vadd.f32 %v375, %v385
      %vm387 = vcmask 7168
      %388 = vst.msk [vmem:[#allocation3] sm:$0xff] %vm387, %v386
      %389 = vst.msk [vmem:[#allocation2] sm:$0xff] %vm387, %v370
      %s390 = smul.u32 %s19, 128
      %s391 = sshra.s32 %s390, 7
      %s392 = sand.u32 %s390, 127
      %s393 = scalar_lea.vmem %s213, %s391
      %394 = vst [vmem:[%s393] sm:$0xff] %v364
      // Predicated region
      $region37: #{generator_forward.1} parent=31 // pred_check
        %p395 = pneg %p214
      $region38: #{generator_forward.1} parent=31 // pred_check_branch
        %397 = sbr.rel (%p395) target = $region40
      $region39: #{generator_forward.1} parent=31 // pred_region
        %v398 = vld [vmem:[#allocation2] sm:$0xff]
        %v399 = vld [vmem:[#allocation3] sm:$0xff]
        %v400 = vlog2.pop %v399
        %v401 = vmul.f32 %v400, 0.6931472
        %v402 = vadd.f32 %v398, %v401
        %v403 = vld [vmem:[%s213] sm:$0xff]
        %405 = vset.pattern.permute.xlu0 0
        %406 = vperm.xlu0 %405, %v402
        %v407 = vpop.permute.xlu0 %406
        %v409 = vsub.f32 %v403, %v407
        %410 = vst [vmem:[%s213] sm:$0xff] %v409
      $region40: #{generator_forward.1} parent=31 // pred_fallthru
        _
      %p411 = scmp.lt.s32.totalorder %s18, 1
      %s412 = scalar_select %p411, %s18, 1
      %s413 = smul.addr %s412, 8
      %s414 = scalar_lea.vmem %s3, %s413
      // Predicated region
      $region41: #{generator_forward.1} parent=31 // pred_check
        %p415 = pneg %p122
      $region42: #{generator_forward.1} parent=31 // pred_check_branch
        %417 = sbr.rel (%p415) target = $region44
      $region43: #{generator_forward.1} parent=31 // pred_region
        _
      $region44: #{generator_forward.1} parent=31 // pred_fallthru
        _
    $region32: #{generator_forward.1} parent=5 // pred_fallthru
      _
    %p418 = scmp.le.s32.totalorder 2, %s9
    // Predicated region
    $region45: #{generator_forward.1} parent=5 // pred_check
      %p419 = pneg %p418
    $region46: #{generator_forward.1} parent=5 // pred_check_branch
      %421 = sbr.rel (%p419) target = $region48
    $region47: #{generator_forward.1} parent=5 // pred_region
      %s422 = ssub.s32 %s9, 2
      // Predicated region
      $region49: #{generator_forward.1} parent=47 // pred_check
        %p423 = pneg %p128
      $region50: #{generator_forward.1} parent=47 // pred_check_branch
        %425 = sbr.rel (%p423) target = $region52
      $region51: #{generator_forward.1} parent=47 // pred_region
        %p426 = scmp.lt.s32.totalorder %s20, 1
        %s427 = scalar_select %p426, %s20, 1
        %s428 = smul.addr %s427, 8
        %s429 = scalar_lea.vmem %s3, %s428
      $region52: #{generator_forward.1} parent=47 // pred_fallthru
        _
    $region48: #{generator_forward.1} parent=5 // pred_fallthru
      _
  $region6: #{generator_forward.1} parent=0 // loop_footer
    %s13 = sadd.s32 1, %s9
  $region7: #{generator_forward.1} parent=0 // loop_footer_branch
    %8 = sbr.rel target = $region3
  $region8: #{generator_forward.1} parent=0 // loop_exit
    _

</llo_original>
